<compile_context>
chip_gen: v7x
topology: tpu7x:2x2x1
jax: 0.10.0
libtpu: 0.0.40
codegen_flags: <defaults>
</compile_context>

<pallas_src>
import jax
import jax.numpy as jnp
from jax.experimental import pallas as pl
from jax.experimental.pallas import tpu as pltpu


_LANE = 128
_SUBLANE = 16          # satisfies both bf16 (16) and f32 (8) sublane packing
_MIN_GRID_B = 8        # target batch-axis grid steps (pipelining + v7x megacore)


def _round_up(x, m):
    return (x + m - 1) // m * m


def _tpu_budgets():
    """Generation-aware VMEM budgets (v7x: 64 MiB/core; v5e/v6e: 128 MiB)."""
    try:
        vmem_cap = int(pltpu.get_tpu_info().vmem_capacity_bytes)
    except Exception:
        vmem_cap = 64 << 20                                  # conservative fallback
    vmem_limit = max(vmem_cap - (24 << 20), 32 << 20)        # ~40 MiB v7x / ~104 MiB v5e,v6e
    tile_budget = vmem_limit - (8 << 20)                     # headroom for compiler scratch
    max_tile_b = 2048 if vmem_cap >= (100 << 20) else 1024
    w_resident_budget = tile_budget // 4                     # above this, stream W by class tiles
    return {
        "vmem_cap": vmem_cap,
        "vmem_limit": vmem_limit,
        "tile_budget": tile_budget,
        "max_tile_b": max_tile_b,
        "w_resident_budget": w_resident_budget,
    }


def _linear_probe_kernel(x_ref, w_ref, b_ref, o_ref):
    # x_ref: (TB, E) native input dtype; w_ref: (E, TC) compute dtype;
    # b_ref: (1, TC) f32; o_ref: (TB, TC) out dtype.
    # Any dtype cast is a per-tile VPU op here, so the wrapper never materializes
    # a casted copy of x in HBM.  MXU accumulates in f32.
    x = x_ref[...]
    if x.dtype != w_ref.dtype:
        x = x.astype(w_ref.dtype)
    acc = jnp.dot(x, w_ref[...], preferred_element_type=jnp.float32)
    o_ref[...] = (acc + b_ref[...]).astype(o_ref.dtype)


def prepare_linear_probe_params(weight, bias, *, compute_dtype=jnp.bfloat16):
    """One-time parameter prep (call at setup time, NOT per forward call).

    Args:
      weight: [num_classes, embedding_dim]  (PyTorch nn.Linear layout).
      bias:   [num_classes].
      compute_dtype: MXU input dtype. bf16 is the fast path; pass jnp.float32 for
        strict parity with the f32 PyTorch reference.

    Returns:
      dict with pre-transposed lane-padded W^T [E, C_pad], padded f32 bias
      [1, C_pad], the true num_classes, the class-tile size, and VMEM budgets.
    """
    num_classes, emb = weight.shape
    budgets = _tpu_budgets()

    # Lane-pad the class axis so kernel output stores are unmasked (lane-dense).
    # Wide heads pad/tile to 256 so each W^T N block fills the 256-wide v6e/v7x
    # MXU; on v5e this only costs a little extra zero padding.
    lane = 256 if num_classes >= 256 else _LANE
    c_pad = _round_up(num_classes, lane)

    w_bytes = jnp.dtype(compute_dtype).itemsize
    if emb * c_pad * w_bytes > budgets["w_resident_budget"]:
        # Stream W^T by tiling the class axis for very wide heads.
        tile_c = max(((budgets["w_resident_budget"] // 2) // (emb * w_bytes))
                     // lane * lane, lane)
        c_pad = _round_up(c_pad, tile_c)
    else:
        tile_c = c_pad

    w_t = jnp.zeros((emb, c_pad), dtype=compute_dtype)
    w_t = w_t.at[:, :num_classes].set(weight.T.astype(compute_dtype))
    b = jnp.zeros((1, c_pad), dtype=jnp.float32)
    b = b.at[:, :num_classes].set(bias.astype(jnp.float32).reshape(1, num_classes))

    return {"w_t": w_t, "bias": b, "num_classes": num_classes,
            "tile_c": tile_c, "budgets": budgets}


def _pick_tile_b(batch, emb, tile_c, x_bytes, w_bytes, out_bytes, budgets):
    if batch <= _SUBLANE:
        return batch                 # one block; block dim == full batch is legal
    # tile_b-independent resident bytes: double-buffered W^T block + f32 bias block.
    resident = 2 * emb * tile_c * w_bytes + 2 * tile_c * 4
    per_row = 2 * (emb * x_bytes + tile_c * out_bytes)   # double-buffered x + out rows
    avail = budgets["tile_budget"] - resident
    assert avail >= per_row * _SUBLANE, (
        "class tile too large for the VMEM tile budget; lower tile_c")
    tile_b = min(budgets["max_tile_b"], avail // per_row, batch)
    tile_b = max((tile_b // _SUBLANE) * _SUBLANE, _SUBLANE)
    # Keep >= _MIN_GRID_B batch tiles (when the batch allows) so the BlockSpec
    # pipeline overlaps DMA with the matmul and both v7x TensorCores get work.
    max_tiles = pl.cdiv(batch, _SUBLANE)
    target_tiles = min(_MIN_GRID_B, max_tiles)
    if target_tiles > 1:
        tile_b = min(tile_b, _round_up(pl.cdiv(batch, target_tiles), _SUBLANE))
    return tile_b


def linear_probe_forward(x, params, *, tile_b=None, out_dtype=jnp.float32,
                         return_padded=False):
    """logits = x @ W^T + b.

    Returns [batch, num_classes] in `out_dtype` (f32 default, matching PyTorch).
    With return_padded=True the lane-padded [batch, c_pad] slab is returned so the
    consumer can slice lazily (saves one read+write pass over the logits).
    """
    w_t, bias = params["w_t"], params["bias"]
    num_classes, tile_c = params["num_classes"], params["tile_c"]
    budgets = params["budgets"]

    batch, emb = x.shape
    emb_w, c_pad = w_t.shape
    assert emb == emb_w, "embedding_dim mismatch"

    x_bytes = x.dtype.itemsize
    w_bytes = w_t.dtype.itemsize
    out_bytes = jnp.dtype(out_dtype).itemsize

    if tile_b is None:
        tile_b = _pick_tile_b(batch, emb, tile_c, x_bytes, w_bytes, out_bytes, budgets)
    tile_b = min(tile_b, batch)
    assert tile_b >= 1
    if tile_b < batch:
        assert tile_b % _SUBLANE == 0, "tile_b must be a multiple of 16"

    nb = pl.cdiv(batch, tile_b)      # no jnp.pad: Pallas clips the last partial block,
    nc = c_pad // tile_c             # and out-of-range rows are never written back.

    # Double-buffered VMEM footprint must fit under the limit we ask the compiler for.
    vmem_need = 2 * (tile_b * emb * x_bytes + emb * tile_c * w_bytes
                     + tile_c * 4 + tile_b * tile_c * out_bytes)
    assert vmem_need <= budgets["vmem_limit"], (vmem_need, budgets["vmem_limit"])

    # Loop-order selection: the operand indexed only by the OUTER grid axis is
    # fetched once; the other operand is re-streamed per outer step.  Pick the
    # ordering with the smaller total HBM traffic (matters when W is streamed).
    x_total = batch * emb * x_bytes
    w_total = emb * c_pad * w_bytes
    batch_outer_bytes = x_total + nb * w_total
    class_outer_bytes = nc * x_total + w_total
    class_outer = (nc > 1) and (class_outer_bytes < batch_outer_bytes)

    if class_outer:
        grid = (nc, nb)
        x_map = lambda j, i: (i, 0)
        w_map = lambda j, i: (0, j)
        o_map = lambda j, i: (i, j)
    else:
        grid = (nb, nc)
        x_map = lambda i, j: (i, 0)
        w_map = lambda i, j: (0, j)
        o_map = lambda i, j: (i, j)

    flops = 2 * batch * emb * c_pad
    bytes_accessed = (min(batch_outer_bytes, class_outer_bytes)
                      + batch * c_pad * out_bytes)

    out = pl.pallas_call(
        _linear_probe_kernel,
        out_shape=jax.ShapeDtypeStruct((batch, c_pad), out_dtype),
        grid_spec=pltpu.PrefetchScalarGridSpec(
            num_scalar_prefetch=0,
            grid=grid,
            in_specs=[
                pl.BlockSpec((tile_b, emb), x_map),   # x tile (native dtype)
                pl.BlockSpec((emb, tile_c), w_map),   # W^T column block
                pl.BlockSpec((1, tile_c), w_map),     # f32 bias block
            ],
            out_specs=pl.BlockSpec((tile_b, tile_c), o_map),
        ),
        compiler_params=pltpu.CompilerParams(
            dimension_semantics=("parallel", "parallel"),
            vmem_limit_bytes=budgets["vmem_limit"],
        ),
        cost_estimate=pl.CostEstimate(
            flops=flops, transcendentals=0, bytes_accessed=bytes_accessed),
    )(x, w_t, bias)

    if return_padded:
        return out
    if c_pad == num_classes:
        return out                     # already exact shape — skip the slice pass
    return out[:, :num_classes]


if __name__ == "__main__":
    # Small deterministic example consistent with LinearProbe.forward:
    # x: [batch_size, embedding_dim] -> logits: [batch_size, num_classes]
    batch_size = 8
    embedding_dim = 32
    num_classes = 10

    key = jax.random.PRNGKey(0)
    kx, kw, kb = jax.random.split(key, 3)

    # Deterministic parameter init mimicking nn.Linear (uniform in +/- 1/sqrt(fan_in)).
    bound = 1.0 / (embedding_dim ** 0.5)
    weight = jax.random.uniform(kw, (num_classes, embedding_dim),
                                minval=-bound, maxval=bound, dtype=jnp.float32)
    bias = jax.random.uniform(kb, (num_classes,),
                              minval=-bound, maxval=bound, dtype=jnp.float32)

    # f32 embeddings (what the PyTorch module sees after its .to(float32)); the
    # bf16 cast happens per-tile inside the kernel, never as a wrapper HBM pass.
    x = jax.random.normal(kx, (batch_size, embedding_dim), dtype=jnp.float32)

    params = prepare_linear_probe_params(weight, bias)   # one-time weight prep
    logits = linear_probe_forward(x, params)
    logits = jax.block_until_ready(logits)

    # Reference check in plain JAX (PyTorch semantics: f32 Linear).
    ref = x @ weight.T + bias
    assert logits.shape == (batch_size, num_classes)
    assert logits.dtype == jnp.float32
    # bf16 MXU inputs with f32 accumulation -> bf16-appropriate tolerance.
    assert jnp.allclose(logits, ref, atol=2e-2, rtol=2e-2)

    print("KERNEL_OK")
</pallas_src>

<mosaic_0001>
module attributes {stable_mosaic.version = 11 : i64} {
  func.func @_linear_probe_kernel(%arg0: i32, %arg1: i32, %arg2: memref<8x32xf32, #tpu.memory_space<vmem>>, %arg3: memref<32x128xbf16, #tpu.memory_space<vmem>>, %arg4: memref<1x128xf32, #tpu.memory_space<vmem>>, %arg5: memref<8x128xf32, #tpu.memory_space<vmem>>) attributes {dimension_semantics = [#tpu.dimension_semantics<parallel>, #tpu.dimension_semantics<parallel>], iteration_bounds = array<i64: 1, 1>, scalar_prefetch = 0 : i64, scratch_operands = 0 : i64, tpu.core_type = #tpu.core_type<tc>, window_params = [{transform_indices = @transform_0, window_bounds = array<i64: 8, 32>}, {transform_indices = @transform_1, window_bounds = array<i64: 32, 128>}, {transform_indices = @transform_2, window_bounds = array<i64: 1, 128>}, {transform_indices = @transform_3, window_bounds = array<i64: 8, 128>}]} {
    %c0 = arith.constant 0 : index
    %c0_0 = arith.constant 0 : index
    %0 = vector.load %arg2[%c0, %c0_0] : memref<8x32xf32, #tpu.memory_space<vmem>>, vector<8x32xf32>
    %1 = arith.truncf %0 : vector<8x32xf32> to vector<8x32xbf16>
    %c0_1 = arith.constant 0 : index
    %c0_2 = arith.constant 0 : index
    %2 = vector.load %arg3[%c0_1, %c0_2] : memref<32x128xbf16, #tpu.memory_space<vmem>>, vector<32x128xbf16>
    %cst = arith.constant dense<0.000000e+00> : vector<8x128xf32>
    %3 = tpu.matmul %1, %2, %cst {dimension_numbers = #tpu.dot_dimension_numbers<[1], [0], [0], [1], [0, 0, 1, 1], [], []>} : vector<8x32xbf16>, vector<32x128xbf16>, vector<8x128xf32> -> vector<8x128xf32>
    %c0_3 = arith.constant 0 : index
    %c0_4 = arith.constant 0 : index
    %4 = vector.load %arg4[%c0_3, %c0_4] : memref<1x128xf32, #tpu.memory_space<vmem>>, vector<1x128xf32>
    %5 = vector.broadcast %4 : vector<1x128xf32> to vector<8x128xf32>
    %6 = arith.addf %3, %5 : vector<8x128xf32>
    %c0_5 = arith.constant 0 : index
    %c0_6 = arith.constant 0 : index
    %7 = vector.load %arg5[%c0_5, %c0_6] : memref<8x128xf32, #tpu.memory_space<vmem>>, vector<8x128xf32>
    tpu.vector_store %arg5[%c0_5, %c0_6], %6 {strides = array<i32>} : memref<8x128xf32, #tpu.memory_space<vmem>>, vector<8x128xf32>,
    return
  }
  func.func @transform_0(%arg0: i32, %arg1: i32) -> (i32, i32) {
    %c0_i32 = arith.constant 0 : i32
    %c0_i32_0 = arith.constant 0 : i32
    return %arg0, %c0_i32 : i32, i32
  }
  func.func @transform_1(%arg0: i32, %arg1: i32) -> (i32, i32) {
    %c0_i32 = arith.constant 0 : i32
    %c0_i32_0 = arith.constant 0 : i32
    return %c0_i32, %arg1 : i32, i32
  }
  func.func @transform_2(%arg0: i32, %arg1: i32) -> (i32, i32) {
    %c0_i32 = arith.constant 0 : i32
    %c0_i32_0 = arith.constant 0 : i32
    return %c0_i32, %arg1 : i32, i32
  }
  func.func @transform_3(%arg0: i32, %arg1: i32) -> (i32, i32) {
    %c0_i32 = arith.constant 0 : i32
    return %arg0, %arg1 : i32, i32
  }
}

</mosaic_0001>

<llo_original>
// kernel: tpu_custom_call.1
$region0: #{tpu_custom_call.1}
  #allocation0 [shape = 'u32[]', space=smem, size = 0x4, offset = 0x4, fixed_abs, tag = 'smem constant byte address 0x4 - core index']
  #allocation1 [shape = 'u32[144,128]{1,0:T(1,128)}', space=vmem, size = 0x12000, scoped, tag = 'internal scratch']
  %s0 = inlined_call_operand.hbm [shape: f32[8,32], index: 0, kind: input, shape index: {}]
  %s1 = inlined_call_operand.hbm [shape: bf16[32,128], index: 1, kind: input, shape index: {}]
  %s2 = inlined_call_operand.vmem [shape: f32[1,128], index: 2, kind: input, shape index: {}]
  %s3 = inlined_call_operand.hbm [shape: f32[8,128], index: 3, kind: output, shape index: {}]
  %s4 = sld [smem:[#allocation0]]
  $region30: #{tpu_custom_call.1} parent=0
    _
  %s6 = ssub.s32 1, %s4
  %s7 = scalar_select 0, %s6, %s4
  $region1: #{tpu_custom_call.1} parent=0
    #allocation2 [shape = 'u8[4096]{0}', space=vmem, size = 0x1000, scoped, tag = 'input window, operand 0, single buffered']
    #allocation3 [shape = 's32[1]{0}', space=sflag, size = 0x4, scoped, tag = 'scoped memory for tpu_custom_call.1']
    #allocation4 [shape = 's32[1]{0}', space=sflag, size = 0x4, scoped, tag = 'scoped memory for tpu_custom_call.1']
    #allocation5 [shape = 'u8[8192]{0}', space=vmem, size = 0x2000, scoped, tag = 'input window, operand 1, single buffered']
    #allocation6 [shape = 's32[1]{0}', space=sflag, size = 0x4, scoped, tag = 'scoped memory for tpu_custom_call.1']
    #allocation7 [shape = 'u8[4096]{0}', space=vmem, size = 0x1000, scoped, tag = 'output window, operand 0, single buffered']
    %8 = vsyncpa [#allocation3], 0
    %9 = vsyncpa [#allocation6], 0
    %10 = vsyncpa [#allocation4], 0
    // Predicated region
    $region2: #{tpu_custom_call.1} parent=1 // pred_check
      _
    $region3: #{tpu_custom_call.1} parent=1 // pred_check_branch
      %12 = sbr.rel (0) target = $region5
    $region4: #{tpu_custom_call.1} parent=1 // pred_region
      %s14 = ssub.s32 128, 128
      %15 = vsyncadd [#allocation3], %s14
      %s17 = sshll.u32 [#allocation2], 4
      %s18 = int_to_ptr.vmem [resolvable:$true] %s17
      %20 = dma.hbm_to_vmem [thread:$0]  %s0, 128, %s18, [#allocation3]
    $region5: #{tpu_custom_call.1} parent=1 // pred_fallthru
      _
    // Predicated region
    $region6: #{tpu_custom_call.1} parent=1 // pred_check
      _
    $region7: #{tpu_custom_call.1} parent=1 // pred_check_branch
      %22 = sbr.rel (0) target = $region9
    $region8: #{tpu_custom_call.1} parent=1 // pred_region
      %s24 = ssub.s32 256, 256
      %25 = vsyncadd [#allocation6], %s24
      %s26 = sshll.u32 [#allocation5], 4
      %s27 = int_to_ptr.vmem [resolvable:$true] %s26
      %32 = dma.hbm_to_vmem [thread:$0]  %s1, 256, %s27, [#allocation6], 64, 64, 4
    $region9: #{tpu_custom_call.1} parent=1 // pred_fallthru
      _
    // Predicated region
    $region10: #{tpu_custom_call.1} parent=1 // pred_check
      _
    $region11: #{tpu_custom_call.1} parent=1 // pred_check_branch
      %34 = sbr.rel (0) target = $region13
    $region12: #{tpu_custom_call.1} parent=1 // pred_region
      _
    $region13: #{tpu_custom_call.1} parent=1 // pred_fallthru
      _
    // Predicated region
    $region14: #{tpu_custom_call.1} parent=1 // pred_check
      _
    $region15: #{tpu_custom_call.1} parent=1 // pred_check_branch
      %36 = sbr.rel (0) target = $region17
    $region16: #{tpu_custom_call.1} parent=1 // pred_region
      %37 = dma.done [#allocation3], 128
    $region17: #{tpu_custom_call.1} parent=1 // pred_fallthru
      _
    // Predicated region
    $region18: #{tpu_custom_call.1} parent=1 // pred_check
      _
    $region19: #{tpu_custom_call.1} parent=1 // pred_check_branch
      %39 = sbr.rel (0) target = $region21
    $region20: #{tpu_custom_call.1} parent=1 // pred_region
      %40 = dma.done [#allocation6], 256
    $region21: #{tpu_custom_call.1} parent=1 // pred_fallthru
      _
    %v42 = vld [vmem:[#allocation2] sm:$0xff]
    %v43 = vpack.c.bf16 %v42, %v42
    %v44 = vld [vmem:[#allocation5] sm:$0xf]
    %v45 = vld [vmem:[#allocation5 + $0x4] sm:$0xf]
    %v46 = vld [vmem:[#allocation5 + $0x8] sm:$0xf]
    %v47 = vld [vmem:[#allocation5 + $0xc] sm:$0xf]
    %v48 = vld [vmem:[%s2] sm:$0x1]
    %v50 = vlaneseq
    %v51 = vshrl.u32 %v50, 7
    %v52 = vsub.s32 0, %v51
    %v53 = vrot.slane %v48, %v52
    %v59 = vunpack.c.l.b16 %v44
    %v60 = vunpack.c.l.b16 %v45
    %v61 = vunpack.c.l.b16 %v46
    %v62 = vunpack.c.l.b16 %v47
    %v63 = vpack.c.b16 %v60, %v59
    %v64 = vpack.c.b16 %v62, %v61
    %vm67 = vcmask 261120
    %v69 = vsel %vm67, %v43, 0
    %71 = vmatprep.subr.bf16.mxu0 0
    %72 = vmatpush1.bf16.msra.mxu0 %v63
    %73 = vmatprep.subr.bf16.mxu0 0
    %74 = vmatpush1.bf16.msra.mxu0 %v64
    %75 = vmatprep.subr.bf16.mxu0 0
    %76 = vmatpush1.bf16.msra.mxu0 0
    %77 = vmatprep.subr.bf16.mxu0 0
    %78 = vmatpush1.bf16.msra.mxu0 0
    %79 = vmatprep.subr.bf16.mxu0 0
    %80 = vmatpush1.bf16.msra.mxu0 0
    %81 = vmatprep.subr.bf16.mxu0 0
    %82 = vmatpush1.bf16.msra.mxu0 0
    %83 = vmatprep.subr.bf16.mxu0 0
    %84 = vmatpush1.bf16.msra.mxu0 0
    %85 = vmatprep.subr.bf16.mxu0 0
    %86 = vmatpush1.bf16.msra.mxu0 0
    %87 = vmatprep.subr.bf16.mxu0 0
    %88 = vmatpush1.bf16.msra.mxu0 0
    %89 = vmatprep.subr.bf16.mxu0 0
    %90 = vmatpush1.bf16.msra.mxu0 0
    %91 = vmatprep.subr.bf16.mxu0 0
    %92 = vmatpush1.bf16.msra.mxu0 0
    %93 = vmatprep.subr.bf16.mxu0 0
    %94 = vmatpush1.bf16.msra.mxu0 0
    %95 = vmatprep.subr.bf16.mxu0 0
    %96 = vmatpush1.bf16.msra.mxu0 0
    %97 = vmatprep.subr.bf16.mxu0 0
    %98 = vmatpush1.bf16.msra.mxu0 0
    %99 = vmatprep.subr.bf16.mxu0 0
    %100 = vmatpush1.bf16.msra.mxu0 0
    %101 = vmatprep.subr.bf16.mxu0 0
    %102 = vmatpush1.bf16.msra.mxu0 0
    %103 = vmatprep.mubr.bf16.mxu0 0
    %104 = vmatmul.mubr.bf16.gmra.mrb[0].mxu0 %v69
    %v105 = vpop.f32.mrb[0].mxu0
    %v106 = vadd.f32 %v53, %v105
    %v107 = vpop.f32.mrb[0].mxu0
    %v108 = vpop.f32.mrb[0].mxu0
    %v109 = vpop.f32.mrb[0].mxu0
    %110 = vdwg.mxu0
    %111 = vst [vmem:[#allocation7] sm:$0xff] %v106
    // Predicated region
    $region22: #{tpu_custom_call.1} parent=1 // pred_check
      _
    $region23: #{tpu_custom_call.1} parent=1 // pred_check_branch
      %113 = sbr.rel (0) target = $region25
    $region24: #{tpu_custom_call.1} parent=1 // pred_region
      %s115 = ssub.s32 128, 128
      %116 = vsyncadd [#allocation4], %s115
      %s118 = sshll.u32 [#allocation7], 4
      %s119 = int_to_ptr.vmem [resolvable:$true] %s118
      %121 = dma.vmem_to_hbm [thread:$0]  %s119, 128, %s3, [#allocation4]
    $region25: #{tpu_custom_call.1} parent=1 // pred_fallthru
      _
    // Predicated region
    $region26: #{tpu_custom_call.1} parent=1 // pred_check
      _
    $region27: #{tpu_custom_call.1} parent=1 // pred_check_branch
      %123 = sbr.rel (0) target = $region29
    $region28: #{tpu_custom_call.1} parent=1 // pred_region
      %124 = dma.done [#allocation4], 128
    $region29: #{tpu_custom_call.1} parent=1 // pred_fallthru
      _
    %125 = vsyncpa [#allocation3], 1
    %126 = vsyncpa [#allocation6], 1
    %127 = vsyncpa [#allocation4], 1

</llo_original>
